<compile_context>
chip_gen: v6e
topology: v6e:2x2x1
jax: 0.10.0
libtpu: 0.0.40
codegen_flags: <defaults>
</compile_context>

<pallas_src>
import math
import functools
import numpy as np
import jax
import jax.numpy as jnp
from jax import lax
from jax.experimental import pallas as pl
from jax.experimental.pallas import tpu as pltpu

LOG_2PI = math.log(2.0 * math.pi)
LOG_2 = math.log(2.0)
LANES = 128


def _js_kernel(nvalid_ref, qpar_ref, cpar_ref, x_ref, out_ref, *, D, K, R, TRI):
    """x_ref: (D, R, 128) f32 block of samples (feature-major, lane = sample).

    qpar_ref : (D + TRI + 1,) f32 SMEM -> [mean, -0.5*inv upper-tri (off-diag
               doubled), const] for the learned Gaussian q.
    cpar_ref : (K * (D + TRI + 1),) f32 SMEM -> same layout per mixture
               component, with log(weight) folded into the constant.
    """
    o = pl.program_id(0)        # partition (parallel, -> 2 TCs on v7x)
    b = pl.program_id(1)        # sample block (arbitrary, accumulated)
    nb = pl.num_programs(1)

    @pl.when(b == 0)
    def _():
        out_ref[...] = jnp.zeros_like(out_ref)

    # Per-feature slabs, loaded once: list of (R, 128) f32.
    xs = [x_ref[i] for i in range(D)]

    def maha_scaled(zs, coef):
        # -0.5 * z^T C^-1 z using the pre-scaled upper triangle (off-diag x2).
        acc = None
        t = 0
        for i in range(D):
            for j in range(i, D):
                term = coef(t) * (zs[i] * zs[j])
                acc = term if acc is None else acc + term
                t += 1
        return acc
    # TODO(synk): for D >= ~32 move the quadratic form to the MXU
    # (Y = (-0.5*C^-1) @ Z via jnp.dot) instead of the unrolled VPU chain.

    # ---- q = N(x; mean, covariance) in log space ----
    zq = [xs[i] - qpar_ref[i] for i in range(D)]
    log_q = maha_scaled(zq, lambda t: qpar_ref[D + t]) + qpar_ref[D + TRI]

    # ---- mixture: log_pk (log w_k folded in), then logsumexp over k ----
    plen = D + TRI + 1
    log_ps = []
    for k in range(K):
        base = k * plen
        zk = [xs[i] - cpar_ref[base + i] for i in range(D)]
        lp = (maha_scaled(zk, lambda t, base=base: cpar_ref[base + D + t])
              + cpar_ref[base + D + TRI])
        log_ps.append(lp)
    m = log_ps[0]
    for k in range(1, K):
        m = jnp.maximum(m, log_ps[k])
    s = jnp.exp(log_ps[0] - m)
    for k in range(1, K):
        s = s + jnp.exp(log_ps[k] - m)
    log_p = m + jnp.log(s)

    # log_mix = log(0.5*p + 0.5*q) = logaddexp(log_p, log_q) - log 2
    mm = jnp.maximum(log_p, log_q)
    log_mix = mm + jnp.log(jnp.exp(log_p - mm) + jnp.exp(log_q - mm)) - LOG_2

    q = jnp.exp(log_q)
    p = jnp.exp(log_p)
    contrib = q * (log_q - log_mix) + p * (log_p - log_mix)

    # Mask padded samples (x was zero-padded to a whole number of blocks).
    row = lax.broadcasted_iota(jnp.int32, (R, LANES), 0)
    lane = lax.broadcasted_iota(jnp.int32, (R, LANES), 1)
    gidx = (o * nb + b) * (R * LANES) + row * LANES + lane
    contrib = jnp.where(gidx < nvalid_ref[0], contrib, 0.0)

    # Single combined reduction per block, accumulated in the resident output.
    out_ref[...] += 0.5 * jnp.sum(contrib)


def js_forward(sample_data_nd, mean, covariance, comp_means, comp_covs,
               comp_weights, *, num_partitions=2):
    """sample_data_nd: (N, D) f32 (the torch module receives (N, D, 1))."""
    N, D = sample_data_nd.shape
    K = comp_means.shape[0]
    TRI = D * (D + 1) // 2

    # ---------- parameter glue (tiny, plain JAX) ----------
    def pack_params(mean_vec, cov, log_weight):
        inv = jnp.linalg.inv(cov)
        _, logdet = jnp.linalg.slogdet(cov)          # robust vs log(det)
        A = -0.5 * inv
        tri = []
        for i in range(D):
            for j in range(i, D):
                tri.append(A[i, j] if i == j else 2.0 * A[i, j])
        const = -0.5 * logdet - 0.5 * D * LOG_2PI + log_weight
        return jnp.concatenate([mean_vec.reshape(D).astype(jnp.float32),
                                jnp.stack(tri).reshape(TRI).astype(jnp.float32),
                                const.reshape(1).astype(jnp.float32)])

    q_params = pack_params(mean.reshape(D), covariance, jnp.zeros(()))
    c_params = jnp.concatenate([
        pack_params(comp_means[k].reshape(D), comp_covs[k],
                    jnp.log(comp_weights[k]))
        for k in range(K)])

    # ---------- sample layout: (P, NB, D, R, 128) ----------
    P = int(num_partitions)
    rows_total = int(pl.cdiv(N, LANES))
    # ~64 sublane rows per block target; per-block VMEM = D*R*128*4 bytes
    # (<= 64 KiB/feature), comfortably within v7x's 64 MiB with double-buffering.
    R = min(64, max(8, int(pl.cdiv(rows_total, P))))
    R = ((R + 7) // 8) * 8
    BS = R * LANES
    NB = int(pl.cdiv(int(pl.cdiv(N, BS)), P))
    N_pad = P * NB * BS

    # TODO(synk): produce sample data directly in (P, NB, D, R, 128) layout
    # upstream to avoid this wrapper-side transpose/pad (extra HBM pass).
    x_t = sample_data_nd.astype(jnp.float32).T                   # (D, N)
    x_t = jnp.pad(x_t, ((0, 0), (0, N_pad - N)))
    x = x_t.reshape(D, P, NB, R, LANES).transpose(1, 2, 0, 3, 4)

    n_valid = jnp.array([N], dtype=jnp.int32)

    kernel = functools.partial(_js_kernel, D=D, K=K, R=R, TRI=TRI)
    out = pl.pallas_call(
        kernel,
        out_shape=jax.ShapeDtypeStruct((P, 1, 1), jnp.float32),
        grid_spec=pltpu.PrefetchScalarGridSpec(
            num_scalar_prefetch=0,
            grid=(P, NB),
            in_specs=[
                pl.BlockSpec(memory_space=pltpu.SMEM),   # n_valid  (1,)
                pl.BlockSpec(memory_space=pltpu.SMEM),   # q params (flat 1D)
                pl.BlockSpec(memory_space=pltpu.SMEM),   # mixture params (flat 1D)
                pl.BlockSpec((None, None, D, R, LANES),
                             lambda o, b: (o, b, 0, 0, 0)),
            ],
            out_specs=pl.BlockSpec((1, 1, 1), lambda o, b: (o, 0, 0)),
        ),
        compiler_params=pltpu.CompilerParams(
            dimension_semantics=("parallel", "arbitrary")),
    )(n_valid, q_params, c_params, x)
    return jnp.sum(out)


def js_reference(x_nd, mean, covariance, comp_means, comp_covs, comp_weights):
    """Pure-JAX transcription of the PyTorch forward (for verification)."""
    D = x_nd.shape[1]

    def normal(X, m_row, C):
        Z = X - m_row                                        # (N, D)
        quad = jnp.sum(Z * (Z @ jnp.linalg.inv(C).T), axis=1, keepdims=True)
        return jnp.exp(-quad / 2.0 - jnp.log(jnp.linalg.det(C)) / 2.0
                       - D / 2.0 * jnp.log(2.0 * jnp.pi))

    q = normal(x_nd, mean.reshape(1, D), covariance)
    log_q = jnp.log(q)
    p = jnp.zeros_like(q)
    for k in range(comp_means.shape[0]):
        p = p + comp_weights[k] * normal(x_nd, comp_means[k].reshape(1, D),
                                         comp_covs[k])
    log_p = jnp.log(p)
    log_mix = jnp.log(0.5 * p + 0.5 * q)
    return (0.5 * jnp.sum(q * (log_q - log_mix))
            + 0.5 * jnp.sum(p * (log_p - log_mix)))


if __name__ == "__main__":
    # Module defaults: dimensions=2, mean = ones((D,1)), covariance = eye(D).
    D = 2
    N = 128                      # sample_size
    K = 2                        # number of mixture components in dist_params

    key = jax.random.PRNGKey(0)
    sample_data = jax.random.normal(key, (N, D), dtype=jnp.float32) * 1.5 + 0.5

    mean = jnp.ones((D, 1), dtype=jnp.float32)                 # nn.Parameter default
    covariance = jnp.eye(D, dtype=jnp.float32)                 # nn.Parameter default

    # dist_params: fixed Gaussian mixture (mean, covariance, weight) per component.
    comp_means = jnp.array([[0.0, 0.0],
                            [2.0, 1.0]], dtype=jnp.float32)            # (K, D)
    comp_covs = jnp.array([[[1.0, 0.0], [0.0, 1.0]],
                           [[1.5, 0.2], [0.2, 1.0]]], dtype=jnp.float32)  # (K, D, D)
    comp_weights = jnp.array([0.5, 0.5], dtype=jnp.float32)             # (K,)

    loss = js_forward(sample_data, mean, covariance, comp_means, comp_covs,
                      comp_weights)
    loss = jax.block_until_ready(loss)

    ref = js_reference(sample_data, mean, covariance, comp_means, comp_covs,
                       comp_weights)
    np.testing.assert_allclose(np.asarray(loss), np.asarray(ref),
                               rtol=1e-4, atol=1e-4)

    print("KERNEL_OK")
</pallas_src>

<mosaic_0001>
module attributes {stable_mosaic.version = 11 : i64} {
  func.func @_js_kernel(%arg0: i32, %arg1: i32, %arg2: memref<1xi32, #tpu.memory_space<smem>>, %arg3: memref<6xf32, #tpu.memory_space<smem>>, %arg4: memref<12xf32, #tpu.memory_space<smem>>, %arg5: memref<1x1x2x8x128xf32, #tpu.memory_space<vmem>>, %arg6: memref<1x1x1xf32, #tpu.memory_space<vmem>>) attributes {dimension_semantics = [#tpu.dimension_semantics<parallel>, #tpu.dimension_semantics<arbitrary>], iteration_bounds = array<i64: 2, 1>, scalar_prefetch = 0 : i64, scratch_operands = 0 : i64, tpu.core_type = #tpu.core_type<tc>, window_params = [{transform_indices = @transform_0, window_bounds = array<i64: 1>}, {transform_indices = @transform_1, window_bounds = array<i64: 6>}, {transform_indices = @transform_2, window_bounds = array<i64: 12>}, {transform_indices = @transform_3, window_bounds = array<i64: 1, 1, 2, 8, 128>}, {transform_indices = @transform_4, window_bounds = array<i64: 1, 1, 1>}]} {
    %c0_i32 = arith.constant 0 : i32
    %0 = arith.cmpi eq, %arg1, %c0_i32 : i32
    %1 = arith.extui %0 : i1 to i32
    %c0_i32_0 = arith.constant 0 : i32
    %2 = arith.cmpi ne, %1, %c0_i32_0 : i32
    scf.if %2 {
      %cst_27 = arith.constant 0.000000e+00 : f32
      %125 = vector.broadcast %cst_27 : f32 to vector<1x1x1xf32>
      %c0_28 = arith.constant 0 : index
      %c0_29 = arith.constant 0 : index
      %c0_30 = arith.constant 0 : index
      %126 = vector.load %arg6[%c0_28, %c0_29, %c0_30] : memref<1x1x1xf32, #tpu.memory_space<vmem>>, vector<1x1x1xf32>
      tpu.vector_store %arg6[%c0_28, %c0_29, %c0_30], %125 {strides = array<i32>} : memref<1x1x1xf32, #tpu.memory_space<vmem>>, vector<1x1x1xf32>,
    } else {
    }
    %c0 = arith.constant 0 : index
    %c0_1 = arith.constant 0 : index
    %c0_2 = arith.constant 0 : index
    %c0_3 = arith.constant 0 : index
    %c0_4 = arith.constant 0 : index
    %3 = vector.load %arg5[%c0, %c0_1, %c0_2, %c0_3, %c0_4] : memref<1x1x2x8x128xf32, #tpu.memory_space<vmem>>, vector<1x1x1x8x128xf32>
    %4 = vector.shape_cast %3 : vector<1x1x1x8x128xf32> to vector<8x128xf32>
    %c0_5 = arith.constant 0 : index
    %c0_6 = arith.constant 0 : index
    %c1 = arith.constant 1 : index
    %c0_7 = arith.constant 0 : index
    %c0_8 = arith.constant 0 : index
    %5 = vector.load %arg5[%c0_5, %c0_6, %c1, %c0_7, %c0_8] : memref<1x1x2x8x128xf32, #tpu.memory_space<vmem>>, vector<1x1x1x8x128xf32>
    %6 = vector.shape_cast %5 : vector<1x1x1x8x128xf32> to vector<8x128xf32>
    %c0_9 = arith.constant 0 : index
    %7 = memref.load %arg3[%c0_9] : memref<6xf32, #tpu.memory_space<smem>>
    %8 = vector.broadcast %7 : f32 to vector<8x128xf32>
    %9 = arith.subf %4, %8 : vector<8x128xf32>
    %c1_10 = arith.constant 1 : index
    %10 = memref.load %arg3[%c1_10] : memref<6xf32, #tpu.memory_space<smem>>
    %11 = vector.broadcast %10 : f32 to vector<8x128xf32>
    %12 = arith.subf %6, %11 : vector<8x128xf32>
    %c2 = arith.constant 2 : index
    %13 = memref.load %arg3[%c2] : memref<6xf32, #tpu.memory_space<smem>>
    %14 = arith.mulf %9, %9 : vector<8x128xf32>
    %15 = vector.broadcast %13 : f32 to vector<8x128xf32>
    %16 = arith.mulf %15, %14 : vector<8x128xf32>
    %c3 = arith.constant 3 : index
    %17 = memref.load %arg3[%c3] : memref<6xf32, #tpu.memory_space<smem>>
    %18 = arith.mulf %9, %12 : vector<8x128xf32>
    %19 = vector.broadcast %17 : f32 to vector<8x128xf32>
    %20 = arith.mulf %19, %18 : vector<8x128xf32>
    %21 = arith.addf %16, %20 : vector<8x128xf32>
    %c4 = arith.constant 4 : index
    %22 = memref.load %arg3[%c4] : memref<6xf32, #tpu.memory_space<smem>>
    %23 = arith.mulf %12, %12 : vector<8x128xf32>
    %24 = vector.broadcast %22 : f32 to vector<8x128xf32>
    %25 = arith.mulf %24, %23 : vector<8x128xf32>
    %26 = arith.addf %21, %25 : vector<8x128xf32>
    %c5 = arith.constant 5 : index
    %27 = memref.load %arg3[%c5] : memref<6xf32, #tpu.memory_space<smem>>
    %28 = vector.broadcast %27 : f32 to vector<8x128xf32>
    %29 = arith.addf %26, %28 : vector<8x128xf32>
    %c0_11 = arith.constant 0 : index
    %30 = memref.load %arg4[%c0_11] : memref<12xf32, #tpu.memory_space<smem>>
    %31 = vector.broadcast %30 : f32 to vector<8x128xf32>
    %32 = arith.subf %4, %31 : vector<8x128xf32>
    %c1_12 = arith.constant 1 : index
    %33 = memref.load %arg4[%c1_12] : memref<12xf32, #tpu.memory_space<smem>>
    %34 = vector.broadcast %33 : f32 to vector<8x128xf32>
    %35 = arith.subf %6, %34 : vector<8x128xf32>
    %c2_13 = arith.constant 2 : index
    %36 = memref.load %arg4[%c2_13] : memref<12xf32, #tpu.memory_space<smem>>
    %37 = arith.mulf %32, %32 : vector<8x128xf32>
    %38 = vector.broadcast %36 : f32 to vector<8x128xf32>
    %39 = arith.mulf %38, %37 : vector<8x128xf32>
    %c3_14 = arith.constant 3 : index
    %40 = memref.load %arg4[%c3_14] : memref<12xf32, #tpu.memory_space<smem>>
    %41 = arith.mulf %32, %35 : vector<8x128xf32>
    %42 = vector.broadcast %40 : f32 to vector<8x128xf32>
    %43 = arith.mulf %42, %41 : vector<8x128xf32>
    %44 = arith.addf %39, %43 : vector<8x128xf32>
    %c4_15 = arith.constant 4 : index
    %45 = memref.load %arg4[%c4_15] : memref<12xf32, #tpu.memory_space<smem>>
    %46 = arith.mulf %35, %35 : vector<8x128xf32>
    %47 = vector.broadcast %45 : f32 to vector<8x128xf32>
    %48 = arith.mulf %47, %46 : vector<8x128xf32>
    %49 = arith.addf %44, %48 : vector<8x128xf32>
    %c5_16 = arith.constant 5 : index
    %50 = memref.load %arg4[%c5_16] : memref<12xf32, #tpu.memory_space<smem>>
    %51 = vector.broadcast %50 : f32 to vector<8x128xf32>
    %52 = arith.addf %49, %51 : vector<8x128xf32>
    %c6 = arith.constant 6 : index
    %53 = memref.load %arg4[%c6] : memref<12xf32, #tpu.memory_space<smem>>
    %54 = vector.broadcast %53 : f32 to vector<8x128xf32>
    %55 = arith.subf %4, %54 : vector<8x128xf32>
    %c7 = arith.constant 7 : index
    %56 = memref.load %arg4[%c7] : memref<12xf32, #tpu.memory_space<smem>>
    %57 = vector.broadcast %56 : f32 to vector<8x128xf32>
    %58 = arith.subf %6, %57 : vector<8x128xf32>
    %c8 = arith.constant 8 : index
    %59 = memref.load %arg4[%c8] : memref<12xf32, #tpu.memory_space<smem>>
    %60 = arith.mulf %55, %55 : vector<8x128xf32>
    %61 = vector.broadcast %59 : f32 to vector<8x128xf32>
    %62 = arith.mulf %61, %60 : vector<8x128xf32>
    %c9 = arith.constant 9 : index
    %63 = memref.load %arg4[%c9] : memref<12xf32, #tpu.memory_space<smem>>
    %64 = arith.mulf %55, %58 : vector<8x128xf32>
    %65 = vector.broadcast %63 : f32 to vector<8x128xf32>
    %66 = arith.mulf %65, %64 : vector<8x128xf32>
    %67 = arith.addf %62, %66 : vector<8x128xf32>
    %c10 = arith.constant 10 : index
    %68 = memref.load %arg4[%c10] : memref<12xf32, #tpu.memory_space<smem>>
    %69 = arith.mulf %58, %58 : vector<8x128xf32>
    %70 = vector.broadcast %68 : f32 to vector<8x128xf32>
    %71 = arith.mulf %70, %69 : vector<8x128xf32>
    %72 = arith.addf %67, %71 : vector<8x128xf32>
    %c11 = arith.constant 11 : index
    %73 = memref.load %arg4[%c11] : memref<12xf32, #tpu.memory_space<smem>>
    %74 = vector.broadcast %73 : f32 to vector<8x128xf32>
    %75 = arith.addf %72, %74 : vector<8x128xf32>
    %76 = arith.maximumf %52, %75 : vector<8x128xf32>
    %77 = arith.subf %52, %76 : vector<8x128xf32>
    %78 = math.exp %77 : vector<8x128xf32>
    %79 = arith.subf %75, %76 : vector<8x128xf32>
    %80 = math.exp %79 : vector<8x128xf32>
    %81 = arith.addf %78, %80 : vector<8x128xf32>
    %82 = math.log %81 : vector<8x128xf32>
    %83 = arith.addf %76, %82 : vector<8x128xf32>
    %84 = arith.maximumf %83, %29 : vector<8x128xf32>
    %85 = arith.subf %83, %84 : vector<8x128xf32>
    %86 = math.exp %85 : vector<8x128xf32>
    %87 = arith.subf %29, %84 : vector<8x128xf32>
    %88 = math.exp %87 : vector<8x128xf32>
    %89 = arith.addf %86, %88 : vector<8x128xf32>
    %90 = math.log %89 : vector<8x128xf32>
    %91 = arith.addf %84, %90 : vector<8x128xf32>
    %cst = arith.constant 0.693147182 : f32
    %92 = vector.broadcast %cst : f32 to vector<8x128xf32>
    %93 = arith.subf %91, %92 : vector<8x128xf32>
    %94 = math.exp %29 : vector<8x128xf32>
    %95 = math.exp %83 : vector<8x128xf32>
    %96 = arith.subf %29, %93 : vector<8x128xf32>
    %97 = arith.mulf %94, %96 : vector<8x128xf32>
    %98 = arith.subf %83, %93 : vector<8x128xf32>
    %99 = arith.mulf %95, %98 : vector<8x128xf32>
    %100 = arith.addf %97, %99 : vector<8x128xf32>
    %101 = tpu.iota {dimensions = array<i32: 0>} : vector<8x128xi32>
    %102 = tpu.iota {dimensions = array<i32: 1>} : vector<8x128xi32>
    %c1_i32 = arith.constant 1 : i32
    %103 = arith.muli %arg0, %c1_i32 : i32
    %104 = arith.addi %103, %arg1 : i32
    %c1024_i32 = arith.constant 1024 : i32
    %105 = arith.muli %104, %c1024_i32 : i32
    %c128_i32 = arith.constant 128 : i32
    %106 = vector.broadcast %c128_i32 : i32 to vector<8x128xi32>
    %107 = arith.muli %101, %106 : vector<8x128xi32>
    %108 = vector.broadcast %105 : i32 to vector<8x128xi32>
    %109 = arith.addi %108, %107 : vector<8x128xi32>
    %110 = arith.addi %109, %102 : vector<8x128xi32>
    %c0_17 = arith.constant 0 : index
    %111 = memref.load %arg2[%c0_17] : memref<1xi32, #tpu.memory_space<smem>>
    %112 = vector.broadcast %111 : i32 to vector<8x128xi32>
    %113 = arith.cmpi slt, %110, %112 : vector<8x128xi32>
    %cst_18 = arith.constant 0.000000e+00 : f32
    %114 = vector.broadcast %cst_18 : f32 to vector<8x128xf32>
    %115 = arith.select %113, %100, %114 : vector<8x128xi1>, vector<8x128xf32>
    %c0_19 = arith.constant 0 : index
    %c0_20 = arith.constant 0 : index
    %c0_21 = arith.constant 0 : index
    %116 = vector.load %arg6[%c0_19, %c0_20, %c0_21] : memref<1x1x1xf32, #tpu.memory_space<vmem>>, vector<1x1x1xf32>
    %117 = vector.shape_cast %115 : vector<8x128xf32> to vector<1x8x128xf32>
    %cst_22 = arith.constant dense<0.000000e+00> : vector<1xf32>
    %118 = vector.multi_reduction <add>, %117, %cst_22 [1, 2] : vector<1x8x128xf32> to vector<1xf32>
    %119 = vector.shape_cast %118 : vector<1xf32> to vector<1x1x1xf32>
    %120 = vector.extract %119[0, 0, 0] : f32 from vector<1x1x1xf32>
    %cst_23 = arith.constant 5.000000e-01 : f32
    %121 = arith.mulf %cst_23, %120 : f32
    %122 = vector.broadcast %121 : f32 to vector<1x1x1xf32>
    %123 = arith.addf %116, %122 : vector<1x1x1xf32>
    %c0_24 = arith.constant 0 : index
    %c0_25 = arith.constant 0 : index
    %c0_26 = arith.constant 0 : index
    %124 = vector.load %arg6[%c0_24, %c0_25, %c0_26] : memref<1x1x1xf32, #tpu.memory_space<vmem>>, vector<1x1x1xf32>
    tpu.vector_store %arg6[%c0_24, %c0_25, %c0_26], %123 {strides = array<i32>} : memref<1x1x1xf32, #tpu.memory_space<vmem>>, vector<1x1x1xf32>,
    return
  }
  func.func @transform_0(%arg0: i32, %arg1: i32) -> i32 {
    %c0_i32 = arith.constant 0 : i32
    %c0_i32_0 = arith.constant 0 : i32
    return %c0_i32 : i32
  }
  func.func @transform_1(%arg0: i32, %arg1: i32) -> i32 {
    %c0_i32 = arith.constant 0 : i32
    %c0_i32_0 = arith.constant 0 : i32
    return %c0_i32 : i32
  }
  func.func @transform_2(%arg0: i32, %arg1: i32) -> i32 {
    %c0_i32 = arith.constant 0 : i32
    %c0_i32_0 = arith.constant 0 : i32
    return %c0_i32 : i32
  }
  func.func @transform_3(%arg0: i32, %arg1: i32) -> (i32, i32, i32, i32, i32) {
    %c0_i32 = arith.constant 0 : i32
    %c0_i32_0 = arith.constant 0 : i32
    %c0_i32_1 = arith.constant 0 : i32
    %c0_i32_2 = arith.constant 0 : i32
    return %arg0, %arg1, %c0_i32, %c0_i32_0, %c0_i32_1 : i32, i32, i32, i32, i32
  }
  func.func @transform_4(%arg0: i32, %arg1: i32) -> (i32, i32, i32) {
    %c0_i32 = arith.constant 0 : i32
    %c0_i32_0 = arith.constant 0 : i32
    %c0_i32_1 = arith.constant 0 : i32
    return %arg0, %c0_i32, %c0_i32_0 : i32, i32, i32
  }
}

</mosaic_0001>

<llo_original>
// kernel: tpu_custom_call.1
$region0: #{tpu_custom_call.1}
  #allocation0 [shape = 'u32[]', space=smem, size = 0x4, offset = 0x4, fixed_abs, tag = 'smem constant byte address 0x4 - core index']
  #allocation1 [shape = 'u32[144,128]{1,0:T(1,128)}', space=vmem, size = 0x12000, scoped, tag = 'internal scratch']
  #allocation2 [shape = 's32[1]{0:T(128)S(6)}', space=smem, size = 0x200, scoped, tag = 'scoped memory for tpu_custom_call.1']
  %s0 = inlined_call_operand.<no memory space> [shape: s32[1], index: 0, kind: input, shape index: {}]
  %s1 = inlined_call_operand.vmem [shape: f32[6], index: 1, kind: input, shape index: {}]
  %s2 = inlined_call_operand.vmem [shape: f32[12], index: 2, kind: input, shape index: {}]
  %s3 = inlined_call_operand.hbm [shape: f32[2,1,2,8,128], index: 3, kind: input, shape index: {}]
  %s4 = inlined_call_operand.vmem [shape: f32[2,1,1], index: 4, kind: output, shape index: {}]
  %s5 = sld [smem:[#allocation0]]
  $region65: #{tpu_custom_call.1} parent=0
    _
  %s7 = ssub.s32 1, %s5
  %s8 = scalar_select 0, %s7, %s5
  %9 = sst [smem:[#allocation2]] %s0
  $region1: #{tpu_custom_call.1} parent=0
    #allocation3 [shape = 'u8[512]{0}', space=smem, size = 0x200, scoped, tag = 'input window, operand 1, single buffered']
    #allocation4 [shape = 's32[2]{0}', space=sflag, size = 0x8, scoped, tag = 'scoped memory for tpu_custom_call.1']
    #allocation5 [shape = 's32[2]{0}', space=sflag, size = 0x8, scoped, tag = 'scoped memory for tpu_custom_call.1']
    #allocation6 [shape = 'u8[512]{0}', space=smem, size = 0x200, scoped, tag = 'input window, operand 2, single buffered']
    #allocation7 [shape = 's32[1]{0}', space=sflag, size = 0x4, scoped, tag = 'scoped memory for tpu_custom_call.1']
    #allocation8 [shape = 'u8[16384]{0}', space=vmem, size = 0x4000, scoped, tag = 'input window, operand 3']
    %10 = vsyncpa [#allocation5], 0
    %11 = vsyncpa [#allocation7], 0
    %12 = vsyncpa [#allocation4], 0
    %s13 = scalar_lea.sflag [#allocation4], 1
    %14 = vsyncpa %s13, 0
    loop: start=0, step=1, limit=4
    $region2: #{tpu_custom_call.1} parent=1 // loop_pre_header
      _
    $region3: #{tpu_custom_call.1} parent=1 // loop_header
      %s16 = sphi 0, %s20
      %p17 = scmp.ge.s32.totalorder %s16, 4
      %s23 = sphi 0, %s35
      %s24 = sphi 0, %s31
      %s25 = sphi 0, %s23
      %s26 = sphi 0, %s24
      %s27 = sphi 0, %s25
      %s28 = sphi 0, %s26
      %s36 = sphi 0, %s36
      %s38 = sphi 0, %s36
      %s39 = sphi 0, %s38
      %s53 = sphi 0, %s39
      %s57 = sphi 0, %s57
      %s59 = sphi 0, %s57
      %s60 = sphi 0, %s59
      %s74 = sphi 0, %s60
      %s78 = sphi 0, %s78
      %s80 = sphi 0, %s78
      %s81 = sphi 0, %s80
      %s95 = sphi 0, %s81
      %s103 = sphi 0, %s105
      %s106 = sphi 0, %s103
      %s107 = sphi 0, %s106
      %s123 = sphi 0, %s107
      %s129 = sphi 0, %s131
      %s132 = sphi 0, %s129
      %s133 = sphi 0, %s132
      %s149 = sphi 0, %s133
    $region4: #{tpu_custom_call.1} parent=1 // loop_header_branch
      %19 = sbr.rel (%p17) target = $region8
    $region5: #{tpu_custom_call.1} parent=1 // loop_body
      %s21 = ssub.s32 %s16, 1
      %s22 = ssub.s32 %s16, 2
      %s29 = sadd.s32 1, %s24
      %p30 = scmp.ge.s32.totalorder %s29, 1
      %s31 = scalar_select %p30, 0, %s29
      %s32 = sadd.s32 1, %s23
      %s33 = scalar_select %p30, %s32, %s23
      %p34 = scmp.ge.s32.totalorder %s33, 2
      %s35 = scalar_select %p34, 0, %s33
      %s37 = sadd.s32 %s36, 1
      %p40 = scmp.eq.s32.totalorder %s16, 1
      %p41 = scmp.ne.s32.totalorder %s36, %s38
      %p42 = scmp.eq.s32.totalorder %s16, 0
      %p43 = por %p41, %p42
      %p44 = scmp.ne.s32.totalorder %s36, %s38
      %p45 = scmp.eq.s32.totalorder %s21, 1
      %p46 = por %p44, %p45
      %p47 = scmp.ne.s32.totalorder %s38, %s39
      %p48 = scmp.eq.s32.totalorder %s21, 0
      %p49 = por %p47, %p48
      %p50 = scmp.ne.s32.totalorder %s38, %s39
      %p51 = scmp.eq.s32.totalorder %s22, 1
      %p52 = por %p50, %p51
      %p54 = scmp.ne.s32.totalorder %s39, %s53
      %p55 = scmp.eq.s32.totalorder %s22, 0
      %p56 = por %p54, %p55
      %s58 = sadd.s32 %s57, 1
      %p61 = scmp.eq.s32.totalorder %s16, 1
      %p62 = scmp.ne.s32.totalorder %s57, %s59
      %p63 = scmp.eq.s32.totalorder %s16, 0
      %p64 = por %p62, %p63
      %p65 = scmp.ne.s32.totalorder %s57, %s59
      %p66 = scmp.eq.s32.totalorder %s21, 1
      %p67 = por %p65, %p66
      %p68 = scmp.ne.s32.totalorder %s59, %s60
      %p69 = scmp.eq.s32.totalorder %s21, 0
      %p70 = por %p68, %p69
      %p71 = scmp.ne.s32.totalorder %s59, %s60
      %p72 = scmp.eq.s32.totalorder %s22, 1
      %p73 = por %p71, %p72
      %p75 = scmp.ne.s32.totalorder %s60, %s74
      %p76 = scmp.eq.s32.totalorder %s22, 0
      %p77 = por %p75, %p76
      %s79 = sadd.s32 %s78, 1
      %p82 = scmp.eq.s32.totalorder %s16, 1
      %p83 = scmp.ne.s32.totalorder %s78, %s80
      %p84 = scmp.eq.s32.totalorder %s16, 0
      %p85 = por %p83, %p84
      %p86 = scmp.ne.s32.totalorder %s78, %s80
      %p87 = scmp.eq.s32.totalorder %s21, 1
      %p88 = por %p86, %p87
      %p89 = scmp.ne.s32.totalorder %s80, %s81
      %p90 = scmp.eq.s32.totalorder %s21, 0
      %p91 = por %p89, %p90
      %p92 = scmp.ne.s32.totalorder %s80, %s81
      %p93 = scmp.eq.s32.totalorder %s22, 1
      %p94 = por %p92, %p93
      %p96 = scmp.ne.s32.totalorder %s81, %s95
      %p97 = scmp.eq.s32.totalorder %s22, 0
      %p98 = por %p96, %p97
      %s99 = ssub.s32 %s23, %s35
      %s100 = ssub.s32 %s24, %s31
      %s101 = sor.u32 %s99, %s100
      %p102 = scmp.eq.s32.totalorder %s101, 0
      %s104 = sadd.s32 %s103, 1
      %s105 = scalar_select %p102, %s103, %s104
      %p108 = pneg %p102
      %p109 = scmp.eq.s32.totalorder %s16, 1
      %p110 = por %p108, %p109
      %p111 = scmp.ne.s32.totalorder %s103, %s106
      %p112 = scmp.eq.s32.totalorder %s16, 0
      %p113 = por %p111, %p112
      %p114 = scmp.ne.s32.totalorder %s103, %s106
      %p115 = scmp.eq.s32.totalorder %s21, 1
      %p116 = por %p114, %p115
      %p117 = scmp.ne.s32.totalorder %s106, %s107
      %p118 = scmp.eq.s32.totalorder %s21, 0
      %p119 = por %p117, %p118
      %p120 = scmp.ne.s32.totalorder %s106, %s107
      %p121 = scmp.eq.s32.totalorder %s22, 1
      %p122 = por %p120, %p121
      %p124 = scmp.ne.s32.totalorder %s107, %s123
      %p125 = scmp.eq.s32.totalorder %s22, 0
      %p126 = por %p124, %p125
      %s127 = ssub.s32 %s23, %s35
      %p128 = scmp.eq.s32.totalorder %s127, 0
      %s130 = sadd.s32 %s129, 1
      %s131 = scalar_select %p128, %s129, %s130
      %p134 = pneg %p128
      %p135 = scmp.eq.s32.totalorder %s16, 1
      %p136 = por %p134, %p135
      %p137 = scmp.ne.s32.totalorder %s129, %s132
      %p138 = scmp.eq.s32.totalorder %s16, 0
      %p139 = por %p137, %p138
      %p140 = scmp.ne.s32.totalorder %s129, %s132
      %p141 = scmp.eq.s32.totalorder %s21, 1
      %p142 = por %p140, %p141
      %p143 = scmp.ne.s32.totalorder %s132, %s133
      %p144 = scmp.eq.s32.totalorder %s21, 0
      %p145 = por %p143, %p144
      %p146 = scmp.ne.s32.totalorder %s132, %s133
      %p147 = scmp.eq.s32.totalorder %s22, 1
      %p148 = por %p146, %p147
      %p150 = scmp.ne.s32.totalorder %s133, %s149
      %p151 = scmp.eq.s32.totalorder %s22, 0
      %p152 = por %p150, %p151
      %p153 = scmp.le.s32.totalorder 1, %s16
      %p154 = scmp.lt.s32.totalorder %s16, 3
      %p155 = pnand %p153, %p154
      %p156 = pneg %p155
      // Predicated region
      $region9: #{tpu_custom_call.1} parent=5 // pred_check
        _
      $region10: #{tpu_custom_call.1} parent=5 // pred_check_branch
        %158 = sbr.rel (%p155) target = $region12
      $region11: #{tpu_custom_call.1} parent=5 // pred_region
        %s159 = ssub.s32 %s16, 1
        // Predicated region
        $region13: #{tpu_custom_call.1} parent=11 // pred_check
          %p160 = pneg %p49
        $region14: #{tpu_custom_call.1} parent=11 // pred_check_branch
          %162 = sbr.rel (%p160) target = $region16
        $region15: #{tpu_custom_call.1} parent=11 // pred_region
          _
        $region16: #{tpu_custom_call.1} parent=11 // pred_fallthru
          _
        // Predicated region
        $region17: #{tpu_custom_call.1} parent=11 // pred_check
          %p163 = pneg %p70
        $region18: #{tpu_custom_call.1} parent=11 // pred_check_branch
          %165 = sbr.rel (%p163) target = $region20
        $region19: #{tpu_custom_call.1} parent=11 // pred_region
          %s167 = ssub.s32 16, 16
          %168 = vsyncadd [#allocation5], %s167
          %s170 = sshll.u32 %s1, 4
          %s171 = int_to_ptr.vmem [resolvable:$true] %s170
          %173 = dma.vmem_to_smem %s171, 16, [#allocation3], [#allocation5]
        $region20: #{tpu_custom_call.1} parent=11 // pred_fallthru
          _
        // Predicated region
        $region21: #{tpu_custom_call.1} parent=11 // pred_check
          %p174 = pneg %p91
        $region22: #{tpu_custom_call.1} parent=11 // pred_check_branch
          %176 = sbr.rel (%p174) target = $region24
        $region23: #{tpu_custom_call.1} parent=11 // pred_region
          %s178 = ssub.s32 16, 16
          %179 = vsyncadd [#allocation7], %s178
          %s181 = sshll.u32 %s2, 4
          %s182 = int_to_ptr.vmem [resolvable:$true] %s181
          %184 = dma.vmem_to_smem %s182, 16, [#allocation6], [#allocation7]
        $region24: #{tpu_custom_call.1} parent=11 // pred_fallthru
          _
      $region12: #{tpu_custom_call.1} parent=5 // pred_fallthru
        _
      %p185 = scmp.lt.s32.totalorder %s16, 2
      // Predicated region
      $region25: #{tpu_custom_call.1} parent=5 // pred_check
        %p186 = pneg %p185
      $region26: #{tpu_custom_call.1} parent=5 // pred_check_branch
        %188 = sbr.rel (%p186) target = $region28
      $region27: #{tpu_custom_call.1} parent=5 // pred_region
        // Predicated region
        $region29: #{tpu_custom_call.1} parent=27 // pred_check
          %p189 = pneg %p113
        $region30: #{tpu_custom_call.1} parent=27 // pred_check_branch
          %191 = sbr.rel (%p189) target = $region32
        $region31: #{tpu_custom_call.1} parent=27 // pred_region
          %s192 = sand.u32 %s103, 1
          %s193 = scalar_lea.sflag [#allocation4], %s192
          %s194 = sand.u32 %s103, 1
          %s195 = smul.addr %s194, 16
          %s196 = scalar_lea.vmem [#allocation8], %s195
          %s198 = ssub.s32 256, 256
          %199 = vsyncadd %s193, %s198
          %s200 = smul.addr %s24, 2
          %s201 = smul.addr %s23, 2
          %s202 = sadd.s32 %s200, %s201
          %s203 = smul.addr %s202, 128
          %s204 = scalar_lea.hbm %s3, %s203
          %s205 = sshll.u32 %s196, 4
          %s206 = int_to_ptr.vmem [resolvable:$true] %s205
          %211 = dma.hbm_to_vmem [thread:$0]  %s204, 256, %s206, %s193, 128, 128, 8
        $region32: #{tpu_custom_call.1} parent=27 // pred_fallthru
          _
      $region28: #{tpu_custom_call.1} parent=5 // pred_fallthru
        _
      %p212 = scmp.le.s32.totalorder 1, %s16
      %p213 = scmp.lt.s32.totalorder %s16, 3
      %p214 = pnand %p212, %p213
      %p215 = pneg %p214
      // Predicated region
      $region33: #{tpu_custom_call.1} parent=5 // pred_check
        _
      $region34: #{tpu_custom_call.1} parent=5 // pred_check_branch
        %217 = sbr.rel (%p214) target = $region36
      $region35: #{tpu_custom_call.1} parent=5 // pred_region
        %s218 = ssub.s32 %s16, 1
        // Predicated region
        $region37: #{tpu_custom_call.1} parent=35 // pred_check
          %p219 = pneg %p70
        $region38: #{tpu_custom_call.1} parent=35 // pred_check_branch
          %221 = sbr.rel (%p219) target = $region40
        $region39: #{tpu_custom_call.1} parent=35 // pred_region
          %222 = dma.done [#allocation5], 16
        $region40: #{tpu_custom_call.1} parent=35 // pred_fallthru
          _
        // Predicated region
        $region41: #{tpu_custom_call.1} parent=35 // pred_check
          %p223 = pneg %p91
        $region42: #{tpu_custom_call.1} parent=35 // pred_check_branch
          %225 = sbr.rel (%p223) target = $region44
        $region43: #{tpu_custom_call.1} parent=35 // pred_region
          %226 = dma.done [#allocation7], 16
        $region44: #{tpu_custom_call.1} parent=35 // pred_fallthru
          _
        %s227 = sand.u32 %s106, 1
        %s228 = scalar_lea.sflag [#allocation4], %s227
        %s229 = sand.u32 %s106, 1
        %s230 = smul.addr %s229, 16
        %s231 = scalar_lea.vmem [#allocation8], %s230
        // Predicated region
        $region45: #{tpu_custom_call.1} parent=35 // pred_check
          %p232 = pneg %p119
        $region46: #{tpu_custom_call.1} parent=35 // pred_check_branch
          %234 = sbr.rel (%p232) target = $region48
        $region47: #{tpu_custom_call.1} parent=35 // pred_region
          %235 = dma.done %s228, 256
        $region48: #{tpu_custom_call.1} parent=35 // pred_fallthru
          _
        %236 = sfence
        %p237 = pneg %p49
        %p238 = pneg %p46
        %p239 = pneg %p70
        %p240 = pneg %p67
        %p241 = pneg %p91
        %p242 = pneg %p88
        %s243 = sand.u32 %s106, 1
        %s244 = scalar_lea.sflag [#allocation4], %s243
        %s245 = sand.u32 %s106, 1
        %s246 = smul.addr %s245, 16
        %s247 = scalar_lea.vmem [#allocation8], %s246
        %p248 = pneg %p119
        %p249 = pneg %p116
        %p250 = pneg %p145
        %p251 = pneg %p142
        %p252 = scmp.lt.s32.totalorder %s25, 1
        %s253 = scalar_select %p252, %s25, 1
        %s254 = scalar_lea.vmem %s4, %s253
        %p255 = scmp.lt.s32.totalorder %s25, 1
        %s256 = scalar_select %p255, %s25, 1
        %s257 = scalar_lea.vmem %s4, %s256
        %p258 = scmp.eq.s32.totalorder %s26, 0
        // Predicated region
        $region49: #{tpu_custom_call.1} parent=35 // pred_check
          %p259 = pneg %p258
        $region50: #{tpu_custom_call.1} parent=35 // pred_check_branch
          %261 = sbr.rel (%p259) target = $region52
        $region51: #{tpu_custom_call.1} parent=35 // pred_region
          %vm262 = vcmask 0
          %263 = vst.msk [vmem:[%s257] sm:$0x1] %vm262, 0.0
        $region52: #{tpu_custom_call.1} parent=35 // pred_fallthru
          _
        %v264 = vld [vmem:[%s231] sm:$0xff]
        %s265 = scalar_lea.vmem %s231, 8 [#allocation8]
        %v266 = vld [vmem:[%s265] sm:$0xff]
        %s267 = sld [smem:[#allocation3]]
        %v268 = vstv %s267
        %v269 = vsub.f32 %v264, %v268
        %s270 = sld [smem:[#allocation3 + $0x1]]
        %v271 = vstv %s270
        %v272 = vsub.f32 %v266, %v271
        %s273 = sld [smem:[#allocation3 + $0x2]]
        %v274 = vmul.f32 %v269, %v269
        %v275 = vstv %s273
        %v276 = vmul.f32 %v275, %v274
        %s277 = sld [smem:[#allocation3 + $0x3]]
        %v278 = vmul.f32 %v269, %v272
        %v279 = vstv %s277
        %v280 = vmul.f32 %v279, %v278
        %v281 = vadd.f32 %v276, %v280
        %s282 = sld [smem:[#allocation3 + $0x4]]
        %v283 = vmul.f32 %v272, %v272
        %v284 = vstv %s282
        %v285 = vmul.f32 %v284, %v283
        %v286 = vadd.f32 %v281, %v285
        %s287 = sld [smem:[#allocation3 + $0x5]]
        %v288 = vstv %s287
        %v289 = vadd.f32 %v286, %v288
        %s290 = sld [smem:[#allocation6]]
        %v291 = vstv %s290
        %v292 = vsub.f32 %v264, %v291
        %s293 = sld [smem:[#allocation6 + $0x1]]
        %v294 = vstv %s293
        %v295 = vsub.f32 %v266, %v294
        %s296 = sld [smem:[#allocation6 + $0x2]]
        %v297 = vmul.f32 %v292, %v292
        %v298 = vstv %s296
        %v299 = vmul.f32 %v298, %v297
        %s300 = sld [smem:[#allocation6 + $0x3]]
        %v301 = vmul.f32 %v292, %v295
        %v302 = vstv %s300
        %v303 = vmul.f32 %v302, %v301
        %v304 = vadd.f32 %v299, %v303
        %s305 = sld [smem:[#allocation6 + $0x4]]
        %v306 = vmul.f32 %v295, %v295
        %v307 = vstv %s305
        %v308 = vmul.f32 %v307, %v306
        %v309 = vadd.f32 %v304, %v308
        %s310 = sld [smem:[#allocation6 + $0x5]]
        %v311 = vstv %s310
        %v312 = vadd.f32 %v309, %v311
        %s313 = sld [smem:[#allocation6 + $0x6]]
        %v314 = vstv %s313
        %v315 = vsub.f32 %v264, %v314
        %s316 = sld [smem:[#allocation6 + $0x7]]
        %v317 = vstv %s316
        %v318 = vsub.f32 %v266, %v317
        %s319 = sld [smem:[#allocation6 + $0x8]]
        %v320 = vmul.f32 %v315, %v315
        %v321 = vstv %s319
        %v322 = vmul.f32 %v321, %v320
        %s323 = sld [smem:[#allocation6 + $0x9]]
        %v324 = vmul.f32 %v315, %v318
        %v325 = vstv %s323
        %v326 = vmul.f32 %v325, %v324
        %v327 = vadd.f32 %v322, %v326
        %s328 = sld [smem:[#allocation6 + $0xa]]
        %v329 = vmul.f32 %v318, %v318
        %v330 = vstv %s328
        %v331 = vmul.f32 %v330, %v329
        %v332 = vadd.f32 %v327, %v331
        %s333 = sld [smem:[#allocation6 + $0xb]]
        %v334 = vstv %s333
        %v335 = vadd.f32 %v332, %v334
        %v336 = vmax.f32 %v312, %v335
        %v337 = vsub.f32 %v312, %v336
        %v338 = vmul.f32 %v337, 1.442695
        %v339 = vpow.pop %v338
        %v340 = vsub.f32 %v335, %v336
        %v341 = vmul.f32 %v340, 1.442695
        %v342 = vpow.pop %v341
        %v343 = vadd.f32 %v339, %v342
        %v344 = vlog2.pop %v343
        %v345 = vmul.f32 %v344, 0.6931472
        %v346 = vadd.f32 %v336, %v345
        %v347 = vmax.f32 %v346, %v289
        %v348 = vsub.f32 %v346, %v347
        %v349 = vmul.f32 %v348, 1.442695
        %v350 = vpow.pop %v349
        %v351 = vsub.f32 %v289, %v347
        %v352 = vmul.f32 %v351, 1.442695
        %v353 = vpow.pop %v352
        %v354 = vadd.f32 %v350, %v353
        %v355 = vlog2.pop %v354
        %v356 = vmul.f32 %v355, 0.6931472
        %v357 = vadd.f32 %v347, %v356
        %v358 = vsub.f32 %v357, 0.6931472
        %v359 = vmul.f32 %v289, 1.442695
        %v360 = vpow.pop %v359
        %v361 = vmul.f32 %v346, 1.442695
        %v362 = vpow.pop %v361
        %v363 = vsub.f32 %v289, %v358
        %v364 = vmul.f32 %v360, %v363
        %v365 = vsub.f32 %v346, %v358
        %v366 = vmul.f32 %v362, %v365
        %v367 = vadd.f32 %v364, %v366
        %v368 = vlaneseq
        %v369 = vshrl.u32 %v368, 7
        %v370 = vlaneseq
        %v371 = vand.u32 %v370, 127
        %s372 = sadd.s32 %s25, %s26
        %s373 = smul.u32 %s372, 1024
        %v374 = vmul.u32 %v369, 128
        %v375 = vstv %s373
        %v376 = vadd.s32 %v375, %v374
        %v377 = vadd.s32 %v376, %v371
        %s378 = sld [smem:[#allocation2]]
        %v379 = vstv %s378
        %vm380 = vcmp.lt.s32.totalorder %v377, %v379
        %v381 = vsel %vm380, %v367, 0.0
        %v382 = vld [vmem:[%s257] sm:$0x1]
        %383 = vadd.xlane.f32.xlu0 %v381
        %v384 = vpop.xlane.xlu0 %383
        %v385 = vrot.slane %v384, 4
        %v386 = vadd.f32 %v384, %v385
        %v387 = vrot.slane %v386, 2
        %v388 = vadd.f32 %v386, %v387
        %v389 = vrot.slane %v388, 1
        %v390 = vadd.f32 %v388, %v389
        %s391 = vtos %v390
        %s392 = smul.f32 %s391, 0.5
        %v393 = vstv %s392
        %v394 = vadd.f32 %v382, %v393
        %vm395 = vcmask 0
        %396 = vst.msk [vmem:[%s257] sm:$0x1] %vm395, %v394
        %p397 = scmp.lt.s32.totalorder %s25, 1
        %s398 = scalar_select %p397, %s25, 1
        %s399 = scalar_lea.vmem %s4, %s398
        // Predicated region
        $region53: #{tpu_custom_call.1} parent=35 // pred_check
          %p400 = pneg %p142
        $region54: #{tpu_custom_call.1} parent=35 // pred_check_branch
          %402 = sbr.rel (%p400) target = $region56
        $region55: #{tpu_custom_call.1} parent=35 // pred_region
          _
        $region56: #{tpu_custom_call.1} parent=35 // pred_fallthru
          _
      $region36: #{tpu_custom_call.1} parent=5 // pred_fallthru
        _
      %p403 = scmp.le.s32.totalorder 2, %s16
      // Predicated region
      $region57: #{tpu_custom_call.1} parent=5 // pred_check
        %p404 = pneg %p403
      $region58: #{tpu_custom_call.1} parent=5 // pred_check_branch
        %406 = sbr.rel (%p404) target = $region60
      $region59: #{tpu_custom_call.1} parent=5 // pred_region
        %s407 = ssub.s32 %s16, 2
        // Predicated region
        $region61: #{tpu_custom_call.1} parent=59 // pred_check
          %p408 = pneg %p148
        $region62: #{tpu_custom_call.1} parent=59 // pred_check_branch
          %410 = sbr.rel (%p408) target = $region64
        $region63: #{tpu_custom_call.1} parent=59 // pred_region
          %p411 = scmp.lt.s32.totalorder %s27, 1
          %s412 = scalar_select %p411, %s27, 1
          %s413 = scalar_lea.vmem %s4, %s412
        $region64: #{tpu_custom_call.1} parent=59 // pred_fallthru
          _
      $region60: #{tpu_custom_call.1} parent=5 // pred_fallthru
        _
    $region6: #{tpu_custom_call.1} parent=1 // loop_footer
      %s20 = sadd.s32 1, %s16
    $region7: #{tpu_custom_call.1} parent=1 // loop_footer_branch
      %15 = sbr.rel target = $region3
    $region8: #{tpu_custom_call.1} parent=1 // loop_exit
      _
    %414 = vsyncpa [#allocation4], 1
    %s415 = scalar_lea.sflag [#allocation4], 1
    %416 = vsyncpa %s415, 1
    %417 = vsyncpa [#allocation5], 1
    %s418 = scalar_lea.sflag [#allocation5], 1
    %419 = vsyncpa %s418, 1
    %420 = vsyncpa [#allocation7], 1

</llo_original>
